<compile_context>
chip_gen: v7x
topology: tpu7x:2x2x1
jax: 0.10.0
libtpu: 0.0.40
codegen_flags: <defaults>
</compile_context>

<pallas_src>
import jax
import jax.numpy as jnp
import numpy as np
from jax.experimental import pallas as pl
from jax.experimental.pallas import tpu as pltpu


def _conformer_kernel(
    x_ref,        # (1, T, C)  input block (one batch element), f32
    lng_ref,      # (1, C)     LayerNorm gamma, f32
    lnb_ref,      # (1, C)     LayerNorm beta, f32
    w1_ref,       # (C, 2C)    fused pointwise-1 weight [value | gate], bf16
    b1_ref,       # (1, 2C)    fused pointwise-1 bias   [value | gate], f32
    wdw_ref,      # (K, C)     depthwise weight, pre-scaled by BN scale, f32
    bnb_ref,      # (1, C)     folded BatchNorm shift = beta - mean * scale, f32
    w2_ref,       # (C, C)     pointwise-2 weight (transposed), bf16
    b2_ref,       # (1, C)     pointwise-2 bias, f32
    o_ref,        # (1, T, C)  output block
):
    T, C = o_ref.shape[1], o_ref.shape[2]
    K = wdw_ref.shape[0]
    pad = (K - 1) // 2

    x = x_ref[0].astype(jnp.float32)                       # (T, C)

    # ---- LayerNorm over the channel axis (f32 elementwise path) ---------------
    mean = jnp.mean(x, axis=-1, keepdims=True)
    var = jnp.mean((x - mean) * (x - mean), axis=-1, keepdims=True)
    xn = (x - mean) * jax.lax.rsqrt(var + 1e-5)
    xn = xn * lng_ref[0][None, :] + lnb_ref[0][None, :]

    # ---- Fused pointwise conv (C -> 2C) + GLU over channels -------------------
    # Single bf16 matmul with f32 accumulation; value/gate halves sliced afterwards.
    h = jnp.dot(xn.astype(jnp.bfloat16), w1_ref[...],
                preferred_element_type=jnp.float32) + b1_ref[0][None, :]   # (T, 2C)
    a = h[:, :C]
    g = h[:, C:]
    y = a * jax.nn.sigmoid(g)                               # (T, C), f32

    # ---- Depthwise conv over time, SAME padding — in-register -----------------
    # shifted[t] = y[t + d]  (d = k - pad), realized as a sublane roll + row mask.
    # BN scale is already folded into wdw on the host.
    row = jax.lax.broadcasted_iota(jnp.int32, (T, C), 0)
    acc = jnp.zeros((T, C), jnp.float32)
    for k in range(K):                                      # K is small & static: unrolled
        d = k - pad
        if d == 0:
            tap = y
        else:
            shifted = pltpu.roll(y, shift=(-d) % T, axis=0)
            valid = jnp.logical_and(row + d >= 0, row + d < T)
            tap = jnp.where(valid, shifted, 0.0)
        acc = acc + tap * wdw_ref[k][None, :]

    # ---- BatchNorm1d shift (scale folded into wdw) + Swish --------------------
    z = acc + bnb_ref[0][None, :]
    z = z * jax.nn.sigmoid(z)

    # ---- Pointwise conv (C -> C) -----------------------------------------------
    out = jnp.dot(z.astype(jnp.bfloat16), w2_ref[...],
                  preferred_element_type=jnp.float32) + b2_ref[0][None, :]

    o_ref[0] = out.astype(o_ref.dtype)


def conformer_conv_module(x, params, *, kernel_size):
    """x: (B, T, C) float32. Returns (B, T, C)."""
    B, T, C = x.shape
    K = kernel_size

    # Host-side parameter prep (performance):
    #  * fuse value/gate weights+biases into one (C, 2C) / (1, 2C) operand
    #  * cast matmul weights to bf16 (halves weight DMA, bf16-native MXU)
    #  * fold eval-mode BN scale into the depthwise weight
    w1 = jnp.concatenate([params["w1a"], params["w1g"]], axis=1).astype(jnp.bfloat16)
    b1 = jnp.concatenate([params["b1a"], params["b1g"]], axis=1)
    w_dw = (params["w_dw"] * params["bn_scale"]).astype(jnp.float32)
    w2 = params["w2"].astype(jnp.bfloat16)

    const = lambda shape: pl.BlockSpec(shape, lambda b: (0, 0))

    return pl.pallas_call(
        _conformer_kernel,
        out_shape=jax.ShapeDtypeStruct((B, T, C), x.dtype),
        grid_spec=pltpu.PrefetchScalarGridSpec(
            num_scalar_prefetch=0,
            grid=(B,),
            in_specs=[
                pl.BlockSpec((1, T, C), lambda b: (b, 0, 0)),   # x
                const((1, C)),                                   # ln gamma
                const((1, C)),                                   # ln beta
                const((C, 2 * C)),                               # fused w1 (bf16)
                const((1, 2 * C)),                               # fused b1
                const((K, C)),                                   # depthwise weight * bn_scale
                const((1, C)),                                   # bn shift
                const((C, C)),                                   # w2 (bf16)
                const((1, C)),                                   # b2
            ],
            out_specs=pl.BlockSpec((1, T, C), lambda b: (b, 0, 0)),
        ),
        compiler_params=pltpu.CompilerParams(
            dimension_semantics=("parallel",)),   # batch elems independent -> megacore on v7x
    )(
        x,
        params["ln_gamma"], params["ln_beta"],
        w1, b1,
        w_dw,
        params["bn_shift"],
        w2, params["b2"],
    )


def _reference(x, p, *, kernel_size):
    """Pure-JAX reference mirroring the PyTorch forward (eval-mode BN / dropout).

    Matmul operands are cast to bf16 (f32 accumulation) to match the kernel's
    MXU precision; elementwise math stays f32.
    """
    K = kernel_size
    pad = (K - 1) // 2
    B, T, C = x.shape

    mean = jnp.mean(x, axis=-1, keepdims=True)
    var = jnp.mean((x - mean) ** 2, axis=-1, keepdims=True)
    xn = (x - mean) * jax.lax.rsqrt(var + 1e-5) * p["ln_gamma"][0] + p["ln_beta"][0]

    w1 = jnp.concatenate([p["w1a"], p["w1g"]], axis=1).astype(jnp.bfloat16)
    b1 = jnp.concatenate([p["b1a"], p["b1g"]], axis=1)[0]
    h = jnp.dot(xn.astype(jnp.bfloat16), w1, preferred_element_type=jnp.float32) + b1
    a, g = h[..., :C], h[..., C:]
    y = a * jax.nn.sigmoid(g)                                       # (B, T, C)

    yp = jnp.pad(y, ((0, 0), (pad, pad), (0, 0)))
    acc = jnp.zeros_like(y)
    for k in range(K):
        acc = acc + yp[:, k:k + T, :] * p["w_dw"][k][None, None, :]
    z = acc * p["bn_scale"][0] + p["bn_shift"][0]
    z = z * jax.nn.sigmoid(z)

    out = jnp.dot(z.astype(jnp.bfloat16), p["w2"].astype(jnp.bfloat16),
                  preferred_element_type=jnp.float32) + p["b2"][0]
    return out


if __name__ == "__main__":
    B, T, C = 2, 16, 128         # batch, time, dim (C = 128 keeps the lane axis dense)
    K = 7                        # odd kernel_size -> 'SAME' padding
    eps_bn = 1e-5

    key = jax.random.PRNGKey(0)
    ks = jax.random.split(key, 12)

    # Deterministic synthetic parameters (shapes follow the nn.Module __init__).
    ln_gamma = jax.random.normal(ks[0], (1, C), jnp.float32) * 0.1 + 1.0
    ln_beta = jax.random.normal(ks[1], (1, C), jnp.float32) * 0.1
    # PointwiseConv1d(C, 2C): torch weight (2C, C, 1) -> split halves, transposed to (C, C).
    w1_full = jax.random.normal(ks[2], (2 * C, C), jnp.float32) * 0.1
    b1_full = jax.random.normal(ks[3], (2 * C,), jnp.float32) * 0.1
    w1a, w1g = w1_full[:C].T, w1_full[C:].T
    b1a, b1g = b1_full[:C].reshape(1, C), b1_full[C:].reshape(1, C)
    # DepthwiseConv1d: torch weight (C, 1, K) -> (K, C), no bias.
    w_dw = jnp.transpose(jax.random.normal(ks[4], (C, K), jnp.float32) * 0.1)
    # BatchNorm1d(C), eval-mode running stats folded to scale/shift.
    bn_gamma = jax.random.normal(ks[5], (C,), jnp.float32) * 0.1 + 1.0
    bn_beta = jax.random.normal(ks[6], (C,), jnp.float32) * 0.1
    bn_mean = jax.random.normal(ks[7], (C,), jnp.float32) * 0.1
    bn_var = jax.nn.softplus(jax.random.normal(ks[8], (C,), jnp.float32)) + 0.5
    bn_scale = (bn_gamma / jnp.sqrt(bn_var + eps_bn)).reshape(1, C)
    bn_shift = (bn_beta - bn_mean * bn_scale[0]).reshape(1, C)
    # PointwiseConv1d(C, C): torch weight (C, C, 1) -> transposed to (C, C).
    w2 = jax.random.normal(ks[9], (C, C), jnp.float32).T * 0.1
    b2 = (jax.random.normal(ks[10], (C,), jnp.float32) * 0.1).reshape(1, C)

    params = dict(
        ln_gamma=ln_gamma, ln_beta=ln_beta,
        w1a=w1a, b1a=b1a, w1g=w1g, b1g=b1g,
        w_dw=w_dw, bn_scale=bn_scale, bn_shift=bn_shift,
        w2=w2, b2=b2,
    )

    x = jax.random.normal(ks[11], (B, T, C), jnp.float32)

    out = conformer_conv_module(x, params, kernel_size=K)
    out = jax.block_until_ready(out)

    ref = _reference(x, params, kernel_size=K)
    np.testing.assert_allclose(np.asarray(out), np.asarray(ref), rtol=2e-2, atol=2e-2)

    print("KERNEL_OK")
</pallas_src>

<mosaic_0001>
module attributes {stable_mosaic.version = 11 : i64} {
  func.func @_conformer_kernel(%arg0: i32, %arg1: memref<1x16x128xf32, #tpu.memory_space<vmem>>, %arg2: memref<1x128xf32, #tpu.memory_space<vmem>>, %arg3: memref<1x128xf32, #tpu.memory_space<vmem>>, %arg4: memref<128x256xbf16, #tpu.memory_space<vmem>>, %arg5: memref<1x256xf32, #tpu.memory_space<vmem>>, %arg6: memref<7x128xf32, #tpu.memory_space<vmem>>, %arg7: memref<1x128xf32, #tpu.memory_space<vmem>>, %arg8: memref<128x128xbf16, #tpu.memory_space<vmem>>, %arg9: memref<1x128xf32, #tpu.memory_space<vmem>>, %arg10: memref<1x16x128xf32, #tpu.memory_space<vmem>>) attributes {dimension_semantics = [#tpu.dimension_semantics<parallel>], iteration_bounds = array<i64: 2>, scalar_prefetch = 0 : i64, scratch_operands = 0 : i64, tpu.core_type = #tpu.core_type<tc>, window_params = [{transform_indices = @transform_0, window_bounds = array<i64: 1, 16, 128>}, {pipeline_mode = #tpu.pipeline_mode<synchronous>, transform_indices = @transform_1, window_bounds = array<i64: 1, 128>}, {pipeline_mode = #tpu.pipeline_mode<synchronous>, transform_indices = @transform_2, window_bounds = array<i64: 1, 128>}, {pipeline_mode = #tpu.pipeline_mode<synchronous>, transform_indices = @transform_3, window_bounds = array<i64: 128, 256>}, {pipeline_mode = #tpu.pipeline_mode<synchronous>, transform_indices = @transform_4, window_bounds = array<i64: 1, 256>}, {pipeline_mode = #tpu.pipeline_mode<synchronous>, transform_indices = @transform_5, window_bounds = array<i64: 7, 128>}, {pipeline_mode = #tpu.pipeline_mode<synchronous>, transform_indices = @transform_6, window_bounds = array<i64: 1, 128>}, {pipeline_mode = #tpu.pipeline_mode<synchronous>, transform_indices = @transform_7, window_bounds = array<i64: 128, 128>}, {pipeline_mode = #tpu.pipeline_mode<synchronous>, transform_indices = @transform_8, window_bounds = array<i64: 1, 128>}, {transform_indices = @transform_9, window_bounds = array<i64: 1, 16, 128>}]} {
    %c0 = arith.constant 0 : index
    %c0_0 = arith.constant 0 : index
    %c0_1 = arith.constant 0 : index
    %0 = vector.load %arg1[%c0, %c0_0, %c0_1] : memref<1x16x128xf32, #tpu.memory_space<vmem>>, vector<1x16x128xf32>
    %1 = vector.shape_cast %0 : vector<1x16x128xf32> to vector<16x128xf32>
    %cst = arith.constant dense<0.000000e+00> : vector<16xf32>
    %2 = vector.multi_reduction <add>, %1, %cst [1] : vector<16x128xf32> to vector<16xf32>
    %3 = vector.shape_cast %2 : vector<16xf32> to vector<16x1xf32>
    %cst_2 = arith.constant 1.280000e+02 : f32
    %4 = vector.broadcast %cst_2 : f32 to vector<16x1xf32>
    %5 = arith.divf %3, %4 : vector<16x1xf32>
    %6 = vector.broadcast %5 : vector<16x1xf32> to vector<16x128xf32>
    %7 = arith.subf %1, %6 : vector<16x128xf32>
    %8 = vector.broadcast %5 : vector<16x1xf32> to vector<16x128xf32>
    %9 = arith.subf %1, %8 : vector<16x128xf32>
    %10 = arith.mulf %7, %9 : vector<16x128xf32>
    %cst_3 = arith.constant dense<0.000000e+00> : vector<16xf32>
    %11 = vector.multi_reduction <add>, %10, %cst_3 [1] : vector<16x128xf32> to vector<16xf32>
    %12 = vector.shape_cast %11 : vector<16xf32> to vector<16x1xf32>
    %cst_4 = arith.constant 1.280000e+02 : f32
    %13 = vector.broadcast %cst_4 : f32 to vector<16x1xf32>
    %14 = arith.divf %12, %13 : vector<16x1xf32>
    %15 = vector.broadcast %5 : vector<16x1xf32> to vector<16x128xf32>
    %16 = arith.subf %1, %15 : vector<16x128xf32>
    %cst_5 = arith.constant 9.99999974E-6 : f32
    %17 = vector.broadcast %cst_5 : f32 to vector<16x1xf32>
    %18 = arith.addf %14, %17 : vector<16x1xf32>
    %19 = math.rsqrt %18 : vector<16x1xf32>
    %20 = vector.broadcast %19 : vector<16x1xf32> to vector<16x128xf32>
    %21 = arith.mulf %16, %20 : vector<16x128xf32>
    %c0_6 = arith.constant 0 : index
    %c0_7 = arith.constant 0 : index
    %22 = vector.load %arg2[%c0_6, %c0_7] : memref<1x128xf32, #tpu.memory_space<vmem>>, vector<1x128xf32>
    %23 = vector.shape_cast %22 : vector<1x128xf32> to vector<128xf32>
    %24 = vector.shape_cast %23 : vector<128xf32> to vector<1x128xf32>
    %25 = vector.broadcast %24 : vector<1x128xf32> to vector<16x128xf32>
    %26 = arith.mulf %21, %25 : vector<16x128xf32>
    %c0_8 = arith.constant 0 : index
    %c0_9 = arith.constant 0 : index
    %27 = vector.load %arg3[%c0_8, %c0_9] : memref<1x128xf32, #tpu.memory_space<vmem>>, vector<1x128xf32>
    %28 = vector.shape_cast %27 : vector<1x128xf32> to vector<128xf32>
    %29 = vector.shape_cast %28 : vector<128xf32> to vector<1x128xf32>
    %30 = vector.broadcast %29 : vector<1x128xf32> to vector<16x128xf32>
    %31 = arith.addf %26, %30 : vector<16x128xf32>
    %32 = arith.truncf %31 : vector<16x128xf32> to vector<16x128xbf16>
    %c0_10 = arith.constant 0 : index
    %c0_11 = arith.constant 0 : index
    %33 = vector.load %arg4[%c0_10, %c0_11] : memref<128x256xbf16, #tpu.memory_space<vmem>>, vector<128x256xbf16>
    %cst_12 = arith.constant dense<0.000000e+00> : vector<16x256xf32>
    %34 = tpu.matmul %32, %33, %cst_12 {dimension_numbers = #tpu.dot_dimension_numbers<[1], [0], [0], [1], [0, 0, 1, 1], [], []>} : vector<16x128xbf16>, vector<128x256xbf16>, vector<16x256xf32> -> vector<16x256xf32>
    %c0_13 = arith.constant 0 : index
    %c0_14 = arith.constant 0 : index
    %35 = vector.load %arg5[%c0_13, %c0_14] : memref<1x256xf32, #tpu.memory_space<vmem>>, vector<1x256xf32>
    %36 = vector.shape_cast %35 : vector<1x256xf32> to vector<256xf32>
    %37 = vector.shape_cast %36 : vector<256xf32> to vector<1x256xf32>
    %38 = vector.broadcast %37 : vector<1x256xf32> to vector<16x256xf32>
    %39 = arith.addf %34, %38 : vector<16x256xf32>
    %40 = vector.extract_strided_slice %39 {offsets = [0, 0], sizes = [16, 128], strides = [1, 1]} : vector<16x256xf32> to vector<16x128xf32>
    %41 = vector.extract_strided_slice %39 {offsets = [0, 128], sizes = [16, 128], strides = [1, 1]} : vector<16x256xf32> to vector<16x128xf32>
    %42 = arith.negf %41 : vector<16x128xf32>
    %43 = math.exp %42 : vector<16x128xf32>
    %cst_15 = arith.constant 1.000000e+00 : f32
    %44 = vector.broadcast %cst_15 : f32 to vector<16x128xf32>
    %45 = arith.addf %44, %43 : vector<16x128xf32>
    %46 = arith.divf %44, %45 : vector<16x128xf32>
    %47 = arith.mulf %40, %46 : vector<16x128xf32>
    %48 = tpu.iota {dimensions = array<i32: 0>} : vector<16x128xi32>
    %cst_16 = arith.constant 0.000000e+00 : f32
    %49 = vector.broadcast %cst_16 : f32 to vector<16x128xf32>
    %c3_i32 = arith.constant 3 : i32
    %50 = tpu.dynamic_rotate %47 by %c3_i32 dim 0 : vector<16x128xf32>, i32 -> vector<16x128xf32>
    %c-3_i32 = arith.constant -3 : i32
    %51 = vector.broadcast %c-3_i32 : i32 to vector<16x128xi32>
    %52 = arith.addi %48, %51 : vector<16x128xi32>
    %c0_i32 = arith.constant 0 : i32
    %53 = vector.broadcast %c0_i32 : i32 to vector<16x128xi32>
    %54 = arith.cmpi sge, %52, %53 : vector<16x128xi32>
    %c-3_i32_17 = arith.constant -3 : i32
    %55 = vector.broadcast %c-3_i32_17 : i32 to vector<16x128xi32>
    %56 = arith.addi %48, %55 : vector<16x128xi32>
    %c16_i32 = arith.constant 16 : i32
    %57 = vector.broadcast %c16_i32 : i32 to vector<16x128xi32>
    %58 = arith.cmpi slt, %56, %57 : vector<16x128xi32>
    %59 = arith.andi %54, %58 : vector<16x128xi1>
    %cst_18 = arith.constant 0.000000e+00 : f32
    %60 = vector.broadcast %cst_18 : f32 to vector<16x128xf32>
    %61 = arith.select %59, %50, %60 : vector<16x128xi1>, vector<16x128xf32>
    %c0_19 = arith.constant 0 : index
    %c0_20 = arith.constant 0 : index
    %62 = vector.load %arg6[%c0_19, %c0_20] : memref<7x128xf32, #tpu.memory_space<vmem>>, vector<1x128xf32>
    %63 = vector.shape_cast %62 : vector<1x128xf32> to vector<128xf32>
    %64 = vector.shape_cast %63 : vector<128xf32> to vector<1x128xf32>
    %65 = vector.broadcast %64 : vector<1x128xf32> to vector<16x128xf32>
    %66 = arith.mulf %61, %65 : vector<16x128xf32>
    %67 = arith.addf %49, %66 : vector<16x128xf32>
    %c2_i32 = arith.constant 2 : i32
    %68 = tpu.dynamic_rotate %47 by %c2_i32 dim 0 : vector<16x128xf32>, i32 -> vector<16x128xf32>
    %c-2_i32 = arith.constant -2 : i32
    %69 = vector.broadcast %c-2_i32 : i32 to vector<16x128xi32>
    %70 = arith.addi %48, %69 : vector<16x128xi32>
    %c0_i32_21 = arith.constant 0 : i32
    %71 = vector.broadcast %c0_i32_21 : i32 to vector<16x128xi32>
    %72 = arith.cmpi sge, %70, %71 : vector<16x128xi32>
    %c-2_i32_22 = arith.constant -2 : i32
    %73 = vector.broadcast %c-2_i32_22 : i32 to vector<16x128xi32>
    %74 = arith.addi %48, %73 : vector<16x128xi32>
    %c16_i32_23 = arith.constant 16 : i32
    %75 = vector.broadcast %c16_i32_23 : i32 to vector<16x128xi32>
    %76 = arith.cmpi slt, %74, %75 : vector<16x128xi32>
    %77 = arith.andi %72, %76 : vector<16x128xi1>
    %cst_24 = arith.constant 0.000000e+00 : f32
    %78 = vector.broadcast %cst_24 : f32 to vector<16x128xf32>
    %79 = arith.select %77, %68, %78 : vector<16x128xi1>, vector<16x128xf32>
    %c1 = arith.constant 1 : index
    %c0_25 = arith.constant 0 : index
    %80 = vector.load %arg6[%c1, %c0_25] : memref<7x128xf32, #tpu.memory_space<vmem>>, vector<1x128xf32>
    %81 = vector.shape_cast %80 : vector<1x128xf32> to vector<128xf32>
    %82 = vector.shape_cast %81 : vector<128xf32> to vector<1x128xf32>
    %83 = vector.broadcast %82 : vector<1x128xf32> to vector<16x128xf32>
    %84 = arith.mulf %79, %83 : vector<16x128xf32>
    %85 = arith.addf %67, %84 : vector<16x128xf32>
    %c1_i32 = arith.constant 1 : i32
    %86 = tpu.dynamic_rotate %47 by %c1_i32 dim 0 : vector<16x128xf32>, i32 -> vector<16x128xf32>
    %c-1_i32 = arith.constant -1 : i32
    %87 = vector.broadcast %c-1_i32 : i32 to vector<16x128xi32>
    %88 = arith.addi %48, %87 : vector<16x128xi32>
    %c0_i32_26 = arith.constant 0 : i32
    %89 = vector.broadcast %c0_i32_26 : i32 to vector<16x128xi32>
    %90 = arith.cmpi sge, %88, %89 : vector<16x128xi32>
    %c-1_i32_27 = arith.constant -1 : i32
    %91 = vector.broadcast %c-1_i32_27 : i32 to vector<16x128xi32>
    %92 = arith.addi %48, %91 : vector<16x128xi32>
    %c16_i32_28 = arith.constant 16 : i32
    %93 = vector.broadcast %c16_i32_28 : i32 to vector<16x128xi32>
    %94 = arith.cmpi slt, %92, %93 : vector<16x128xi32>
    %95 = arith.andi %90, %94 : vector<16x128xi1>
    %cst_29 = arith.constant 0.000000e+00 : f32
    %96 = vector.broadcast %cst_29 : f32 to vector<16x128xf32>
    %97 = arith.select %95, %86, %96 : vector<16x128xi1>, vector<16x128xf32>
    %c2 = arith.constant 2 : index
    %c0_30 = arith.constant 0 : index
    %98 = vector.load %arg6[%c2, %c0_30] : memref<7x128xf32, #tpu.memory_space<vmem>>, vector<1x128xf32>
    %99 = vector.shape_cast %98 : vector<1x128xf32> to vector<128xf32>
    %100 = vector.shape_cast %99 : vector<128xf32> to vector<1x128xf32>
    %101 = vector.broadcast %100 : vector<1x128xf32> to vector<16x128xf32>
    %102 = arith.mulf %97, %101 : vector<16x128xf32>
    %103 = arith.addf %85, %102 : vector<16x128xf32>
    %c3 = arith.constant 3 : index
    %c0_31 = arith.constant 0 : index
    %104 = vector.load %arg6[%c3, %c0_31] : memref<7x128xf32, #tpu.memory_space<vmem>>, vector<1x128xf32>
    %105 = vector.shape_cast %104 : vector<1x128xf32> to vector<128xf32>
    %106 = vector.shape_cast %105 : vector<128xf32> to vector<1x128xf32>
    %107 = vector.broadcast %106 : vector<1x128xf32> to vector<16x128xf32>
    %108 = arith.mulf %47, %107 : vector<16x128xf32>
    %109 = arith.addf %103, %108 : vector<16x128xf32>
    %c15_i32 = arith.constant 15 : i32
    %110 = tpu.dynamic_rotate %47 by %c15_i32 dim 0 : vector<16x128xf32>, i32 -> vector<16x128xf32>
    %c1_i32_32 = arith.constant 1 : i32
    %111 = vector.broadcast %c1_i32_32 : i32 to vector<16x128xi32>
    %112 = arith.addi %48, %111 : vector<16x128xi32>
    %c0_i32_33 = arith.constant 0 : i32
    %113 = vector.broadcast %c0_i32_33 : i32 to vector<16x128xi32>
    %114 = arith.cmpi sge, %112, %113 : vector<16x128xi32>
    %c1_i32_34 = arith.constant 1 : i32
    %115 = vector.broadcast %c1_i32_34 : i32 to vector<16x128xi32>
    %116 = arith.addi %48, %115 : vector<16x128xi32>
    %c16_i32_35 = arith.constant 16 : i32
    %117 = vector.broadcast %c16_i32_35 : i32 to vector<16x128xi32>
    %118 = arith.cmpi slt, %116, %117 : vector<16x128xi32>
    %119 = arith.andi %114, %118 : vector<16x128xi1>
    %cst_36 = arith.constant 0.000000e+00 : f32
    %120 = vector.broadcast %cst_36 : f32 to vector<16x128xf32>
    %121 = arith.select %119, %110, %120 : vector<16x128xi1>, vector<16x128xf32>
    %c4 = arith.constant 4 : index
    %c0_37 = arith.constant 0 : index
    %122 = vector.load %arg6[%c4, %c0_37] : memref<7x128xf32, #tpu.memory_space<vmem>>, vector<1x128xf32>
    %123 = vector.shape_cast %122 : vector<1x128xf32> to vector<128xf32>
    %124 = vector.shape_cast %123 : vector<128xf32> to vector<1x128xf32>
    %125 = vector.broadcast %124 : vector<1x128xf32> to vector<16x128xf32>
    %126 = arith.mulf %121, %125 : vector<16x128xf32>
    %127 = arith.addf %109, %126 : vector<16x128xf32>
    %c14_i32 = arith.constant 14 : i32
    %128 = tpu.dynamic_rotate %47 by %c14_i32 dim 0 : vector<16x128xf32>, i32 -> vector<16x128xf32>
    %c2_i32_38 = arith.constant 2 : i32
    %129 = vector.broadcast %c2_i32_38 : i32 to vector<16x128xi32>
    %130 = arith.addi %48, %129 : vector<16x128xi32>
    %c0_i32_39 = arith.constant 0 : i32
    %131 = vector.broadcast %c0_i32_39 : i32 to vector<16x128xi32>
    %132 = arith.cmpi sge, %130, %131 : vector<16x128xi32>
    %c2_i32_40 = arith.constant 2 : i32
    %133 = vector.broadcast %c2_i32_40 : i32 to vector<16x128xi32>
    %134 = arith.addi %48, %133 : vector<16x128xi32>
    %c16_i32_41 = arith.constant 16 : i32
    %135 = vector.broadcast %c16_i32_41 : i32 to vector<16x128xi32>
    %136 = arith.cmpi slt, %134, %135 : vector<16x128xi32>
    %137 = arith.andi %132, %136 : vector<16x128xi1>
    %cst_42 = arith.constant 0.000000e+00 : f32
    %138 = vector.broadcast %cst_42 : f32 to vector<16x128xf32>
    %139 = arith.select %137, %128, %138 : vector<16x128xi1>, vector<16x128xf32>
    %c5 = arith.constant 5 : index
    %c0_43 = arith.constant 0 : index
    %140 = vector.load %arg6[%c5, %c0_43] : memref<7x128xf32, #tpu.memory_space<vmem>>, vector<1x128xf32>
    %141 = vector.shape_cast %140 : vector<1x128xf32> to vector<128xf32>
    %142 = vector.shape_cast %141 : vector<128xf32> to vector<1x128xf32>
    %143 = vector.broadcast %142 : vector<1x128xf32> to vector<16x128xf32>
    %144 = arith.mulf %139, %143 : vector<16x128xf32>
    %145 = arith.addf %127, %144 : vector<16x128xf32>
    %c13_i32 = arith.constant 13 : i32
    %146 = tpu.dynamic_rotate %47 by %c13_i32 dim 0 : vector<16x128xf32>, i32 -> vector<16x128xf32>
    %c3_i32_44 = arith.constant 3 : i32
    %147 = vector.broadcast %c3_i32_44 : i32 to vector<16x128xi32>
    %148 = arith.addi %48, %147 : vector<16x128xi32>
    %c0_i32_45 = arith.constant 0 : i32
    %149 = vector.broadcast %c0_i32_45 : i32 to vector<16x128xi32>
    %150 = arith.cmpi sge, %148, %149 : vector<16x128xi32>
    %c3_i32_46 = arith.constant 3 : i32
    %151 = vector.broadcast %c3_i32_46 : i32 to vector<16x128xi32>
    %152 = arith.addi %48, %151 : vector<16x128xi32>
    %c16_i32_47 = arith.constant 16 : i32
    %153 = vector.broadcast %c16_i32_47 : i32 to vector<16x128xi32>
    %154 = arith.cmpi slt, %152, %153 : vector<16x128xi32>
    %155 = arith.andi %150, %154 : vector<16x128xi1>
    %cst_48 = arith.constant 0.000000e+00 : f32
    %156 = vector.broadcast %cst_48 : f32 to vector<16x128xf32>
    %157 = arith.select %155, %146, %156 : vector<16x128xi1>, vector<16x128xf32>
    %c6 = arith.constant 6 : index
    %c0_49 = arith.constant 0 : index
    %158 = vector.load %arg6[%c6, %c0_49] : memref<7x128xf32, #tpu.memory_space<vmem>>, vector<1x128xf32>
    %159 = vector.shape_cast %158 : vector<1x128xf32> to vector<128xf32>
    %160 = vector.shape_cast %159 : vector<128xf32> to vector<1x128xf32>
    %161 = vector.broadcast %160 : vector<1x128xf32> to vector<16x128xf32>
    %162 = arith.mulf %157, %161 : vector<16x128xf32>
    %163 = arith.addf %145, %162 : vector<16x128xf32>
    %c0_50 = arith.constant 0 : index
    %c0_51 = arith.constant 0 : index
    %164 = vector.load %arg7[%c0_50, %c0_51] : memref<1x128xf32, #tpu.memory_space<vmem>>, vector<1x128xf32>
    %165 = vector.shape_cast %164 : vector<1x128xf32> to vector<128xf32>
    %166 = vector.shape_cast %165 : vector<128xf32> to vector<1x128xf32>
    %167 = vector.broadcast %166 : vector<1x128xf32> to vector<16x128xf32>
    %168 = arith.addf %163, %167 : vector<16x128xf32>
    %169 = arith.negf %168 : vector<16x128xf32>
    %170 = math.exp %169 : vector<16x128xf32>
    %cst_52 = arith.constant 1.000000e+00 : f32
    %171 = vector.broadcast %cst_52 : f32 to vector<16x128xf32>
    %172 = arith.addf %171, %170 : vector<16x128xf32>
    %173 = arith.divf %171, %172 : vector<16x128xf32>
    %174 = arith.mulf %168, %173 : vector<16x128xf32>
    %175 = arith.truncf %174 : vector<16x128xf32> to vector<16x128xbf16>
    %c0_53 = arith.constant 0 : index
    %c0_54 = arith.constant 0 : index
    %176 = vector.load %arg8[%c0_53, %c0_54] : memref<128x128xbf16, #tpu.memory_space<vmem>>, vector<128x128xbf16>
    %cst_55 = arith.constant dense<0.000000e+00> : vector<16x128xf32>
    %177 = tpu.matmul %175, %176, %cst_55 {dimension_numbers = #tpu.dot_dimension_numbers<[1], [0], [0], [1], [0, 0, 1, 1], [], []>} : vector<16x128xbf16>, vector<128x128xbf16>, vector<16x128xf32> -> vector<16x128xf32>
    %c0_56 = arith.constant 0 : index
    %c0_57 = arith.constant 0 : index
    %178 = vector.load %arg9[%c0_56, %c0_57] : memref<1x128xf32, #tpu.memory_space<vmem>>, vector<1x128xf32>
    %179 = vector.shape_cast %178 : vector<1x128xf32> to vector<128xf32>
    %180 = vector.shape_cast %179 : vector<128xf32> to vector<1x128xf32>
    %181 = vector.broadcast %180 : vector<1x128xf32> to vector<16x128xf32>
    %182 = arith.addf %177, %181 : vector<16x128xf32>
    %c0_58 = arith.constant 0 : index
    %c0_59 = arith.constant 0 : index
    %c0_60 = arith.constant 0 : index
    %183 = vector.load %arg10[%c0_58, %c0_59, %c0_60] : memref<1x16x128xf32, #tpu.memory_space<vmem>>, vector<1x16x128xf32>
    %184 = vector.shape_cast %183 : vector<1x16x128xf32> to vector<16x128xf32>
    %185 = vector.shape_cast %182 : vector<16x128xf32> to vector<1x16x128xf32>
    tpu.vector_store %arg10[%c0_58, %c0_59, %c0_60], %185 {strides = array<i32>} : memref<1x16x128xf32, #tpu.memory_space<vmem>>, vector<1x16x128xf32>,
    return
  }
  func.func @transform_0(%arg0: i32) -> (i32, i32, i32) {
    %c0_i32 = arith.constant 0 : i32
    %c0_i32_0 = arith.constant 0 : i32
    %c0_i32_1 = arith.constant 0 : i32
    return %arg0, %c0_i32, %c0_i32_0 : i32, i32, i32
  }
  func.func @transform_1(%arg0: i32) -> (i32, i32) {
    %c0_i32 = arith.constant 0 : i32
    %c0_i32_0 = arith.constant 0 : i32
    %c0_i32_1 = arith.constant 0 : i32
    return %c0_i32, %c0_i32_0 : i32, i32
  }
  func.func @transform_2(%arg0: i32) -> (i32, i32) {
    %c0_i32 = arith.constant 0 : i32
    %c0_i32_0 = arith.constant 0 : i32
    %c0_i32_1 = arith.constant 0 : i32
    return %c0_i32, %c0_i32_0 : i32, i32
  }
  func.func @transform_3(%arg0: i32) -> (i32, i32) {
    %c0_i32 = arith.constant 0 : i32
    %c0_i32_0 = arith.constant 0 : i32
    %c0_i32_1 = arith.constant 0 : i32
    return %c0_i32, %c0_i32_0 : i32, i32
  }
  func.func @transform_4(%arg0: i32) -> (i32, i32) {
    %c0_i32 = arith.constant 0 : i32
    %c0_i32_0 = arith.constant 0 : i32
    %c0_i32_1 = arith.constant 0 : i32
    return %c0_i32, %c0_i32_0 : i32, i32
  }
  func.func @transform_5(%arg0: i32) -> (i32, i32) {
    %c0_i32 = arith.constant 0 : i32
    %c0_i32_0 = arith.constant 0 : i32
    %c0_i32_1 = arith.constant 0 : i32
    return %c0_i32, %c0_i32_0 : i32, i32
  }
  func.func @transform_6(%arg0: i32) -> (i32, i32) {
    %c0_i32 = arith.constant 0 : i32
    %c0_i32_0 = arith.constant 0 : i32
    %c0_i32_1 = arith.constant 0 : i32
    return %c0_i32, %c0_i32_0 : i32, i32
  }
  func.func @transform_7(%arg0: i32) -> (i32, i32) {
    %c0_i32 = arith.constant 0 : i32
    %c0_i32_0 = arith.constant 0 : i32
    %c0_i32_1 = arith.constant 0 : i32
    return %c0_i32, %c0_i32_0 : i32, i32
  }
  func.func @transform_8(%arg0: i32) -> (i32, i32) {
    %c0_i32 = arith.constant 0 : i32
    %c0_i32_0 = arith.constant 0 : i32
    %c0_i32_1 = arith.constant 0 : i32
    return %c0_i32, %c0_i32_0 : i32, i32
  }
  func.func @transform_9(%arg0: i32) -> (i32, i32, i32) {
    %c0_i32 = arith.constant 0 : i32
    %c0_i32_0 = arith.constant 0 : i32
    %c0_i32_1 = arith.constant 0 : i32
    return %arg0, %c0_i32, %c0_i32_0 : i32, i32, i32
  }
}

</mosaic_0001>

<llo_original>
// kernel: tpu_custom_call.1
$region0: #{tpu_custom_call.1}
  #allocation0 [shape = 'u32[]', space=smem, size = 0x4, offset = 0x4, fixed_abs, tag = 'smem constant byte address 0x4 - core index']
  #allocation1 [shape = 'u32[144,128]{1,0:T(1,128)}', space=vmem, size = 0x12000, scoped, tag = 'internal scratch']
  %s0 = inlined_call_operand.hbm [shape: f32[2,16,128], index: 0, kind: input, shape index: {}]
  %s1 = inlined_call_operand.vmem [shape: f32[1,128], index: 1, kind: input, shape index: {}]
  %s2 = inlined_call_operand.vmem [shape: f32[1,128], index: 2, kind: input, shape index: {}]
  %s3 = inlined_call_operand.hbm [shape: bf16[128,256], index: 3, kind: input, shape index: {}]
  %s4 = inlined_call_operand.vmem [shape: f32[1,256], index: 4, kind: input, shape index: {}]
  %s5 = inlined_call_operand.vmem [shape: f32[7,128], index: 5, kind: input, shape index: {}]
  %s6 = inlined_call_operand.vmem [shape: f32[1,128], index: 6, kind: input, shape index: {}]
  %s7 = inlined_call_operand.hbm [shape: bf16[128,128], index: 7, kind: input, shape index: {}]
  %s8 = inlined_call_operand.vmem [shape: f32[1,128], index: 8, kind: input, shape index: {}]
  %s9 = inlined_call_operand.hbm [shape: f32[2,16,128], index: 9, kind: output, shape index: {}]
  %s10 = sld [smem:[#allocation0]]
  $region81: #{tpu_custom_call.1} parent=0
    _
  %s12 = ssub.s32 1, %s10
  %s13 = scalar_select 0, %s12, %s10
  $region1: #{tpu_custom_call.1} parent=0
    #allocation2 [shape = 'u8[16384]{0}', space=vmem, size = 0x4000, scoped, tag = 'input window, operand 0']
    #allocation3 [shape = 's32[2]{0}', space=sflag, size = 0x8, scoped, tag = 'scoped memory for tpu_custom_call.1']
    #allocation4 [shape = 's32[2]{0}', space=sflag, size = 0x8, scoped, tag = 'scoped memory for tpu_custom_call.1']
    #allocation5 [shape = 'u8[65536]{0}', space=vmem, size = 0x10000, scoped, tag = 'input window, operand 3, single buffered']
    #allocation6 [shape = 's32[1]{0}', space=sflag, size = 0x4, scoped, tag = 'scoped memory for tpu_custom_call.1']
    #allocation7 [shape = 'u8[32768]{0}', space=vmem, size = 0x8000, scoped, tag = 'input window, operand 7, single buffered']
    #allocation8 [shape = 'u8[16384]{0}', space=vmem, size = 0x4000, scoped, tag = 'output window, operand 0']
    %14 = vsyncpa [#allocation3], 0
    %s15 = scalar_lea.sflag [#allocation3], 1
    %16 = vsyncpa %s15, 0
    %17 = vsyncpa [#allocation6], 0
    %18 = vsyncpa [#allocation4], 0
    %s19 = scalar_lea.sflag [#allocation4], 1
    %20 = vsyncpa %s19, 0
    loop: start=0, step=1, limit=4
    $region2: #{tpu_custom_call.1} parent=1 // loop_pre_header
      _
    $region3: #{tpu_custom_call.1} parent=1 // loop_header
      %s22 = sphi 0, %s26
      %p23 = scmp.ge.s32.totalorder %s22, 4
      %s32 = sphi 0, %s34
      %s35 = sphi 0, %s32
      %s36 = sphi 0, %s35
      %s52 = sphi 0, %s36
      %s56 = sphi 0, %s56
      %s58 = sphi 0, %s56
      %s59 = sphi 0, %s58
      %s73 = sphi 0, %s59
      %s77 = sphi 0, %s77
      %s79 = sphi 0, %s77
      %s80 = sphi 0, %s79
      %s94 = sphi 0, %s80
      %s98 = sphi 0, %s98
      %s100 = sphi 0, %s98
      %s101 = sphi 0, %s100
      %s115 = sphi 0, %s101
      %s119 = sphi 0, %s119
      %s121 = sphi 0, %s119
      %s122 = sphi 0, %s121
      %s136 = sphi 0, %s122
      %s140 = sphi 0, %s140
      %s142 = sphi 0, %s140
      %s143 = sphi 0, %s142
      %s157 = sphi 0, %s143
      %s161 = sphi 0, %s161
      %s163 = sphi 0, %s161
      %s164 = sphi 0, %s163
      %s178 = sphi 0, %s164
      %s182 = sphi 0, %s182
      %s184 = sphi 0, %s182
      %s185 = sphi 0, %s184
      %s199 = sphi 0, %s185
      %s203 = sphi 0, %s203
      %s205 = sphi 0, %s203
      %s206 = sphi 0, %s205
      %s220 = sphi 0, %s206
      %s226 = sphi 0, %s228
      %s229 = sphi 0, %s226
      %s230 = sphi 0, %s229
      %s246 = sphi 0, %s230
    $region4: #{tpu_custom_call.1} parent=1 // loop_header_branch
      %25 = sbr.rel (%p23) target = $region8
    $region5: #{tpu_custom_call.1} parent=1 // loop_body
      %s27 = ssub.s32 %s22, 1
      %s28 = ssub.s32 %s22, 2
      %s29 = sadd.s32 %s22, 1
      %s30 = ssub.s32 %s22, %s29
      %p31 = scmp.eq.s32.totalorder %s30, 0
      %s33 = sadd.s32 %s32, 1
      %s34 = scalar_select %p31, %s32, %s33
      %p37 = pneg %p31
      %p38 = scmp.eq.s32.totalorder %s22, 1
      %p39 = por %p37, %p38
      %p40 = scmp.ne.s32.totalorder %s32, %s35
      %p41 = scmp.eq.s32.totalorder %s22, 0
      %p42 = por %p40, %p41
      %p43 = scmp.ne.s32.totalorder %s32, %s35
      %p44 = scmp.eq.s32.totalorder %s27, 1
      %p45 = por %p43, %p44
      %p46 = scmp.ne.s32.totalorder %s35, %s36
      %p47 = scmp.eq.s32.totalorder %s27, 0
      %p48 = por %p46, %p47
      %p49 = scmp.ne.s32.totalorder %s35, %s36
      %p50 = scmp.eq.s32.totalorder %s28, 1
      %p51 = por %p49, %p50
      %p53 = scmp.ne.s32.totalorder %s36, %s52
      %p54 = scmp.eq.s32.totalorder %s28, 0
      %p55 = por %p53, %p54
      %s57 = sadd.s32 %s56, 1
      %p60 = scmp.eq.s32.totalorder %s22, 1
      %p61 = scmp.ne.s32.totalorder %s56, %s58
      %p62 = scmp.eq.s32.totalorder %s22, 0
      %p63 = por %p61, %p62
      %p64 = scmp.ne.s32.totalorder %s56, %s58
      %p65 = scmp.eq.s32.totalorder %s27, 1
      %p66 = por %p64, %p65
      %p67 = scmp.ne.s32.totalorder %s58, %s59
      %p68 = scmp.eq.s32.totalorder %s27, 0
      %p69 = por %p67, %p68
      %p70 = scmp.ne.s32.totalorder %s58, %s59
      %p71 = scmp.eq.s32.totalorder %s28, 1
      %p72 = por %p70, %p71
      %p74 = scmp.ne.s32.totalorder %s59, %s73
      %p75 = scmp.eq.s32.totalorder %s28, 0
      %p76 = por %p74, %p75
      %s78 = sadd.s32 %s77, 1
      %p81 = scmp.eq.s32.totalorder %s22, 1
      %p82 = scmp.ne.s32.totalorder %s77, %s79
      %p83 = scmp.eq.s32.totalorder %s22, 0
      %p84 = por %p82, %p83
      %p85 = scmp.ne.s32.totalorder %s77, %s79
      %p86 = scmp.eq.s32.totalorder %s27, 1
      %p87 = por %p85, %p86
      %p88 = scmp.ne.s32.totalorder %s79, %s80
      %p89 = scmp.eq.s32.totalorder %s27, 0
      %p90 = por %p88, %p89
      %p91 = scmp.ne.s32.totalorder %s79, %s80
      %p92 = scmp.eq.s32.totalorder %s28, 1
      %p93 = por %p91, %p92
      %p95 = scmp.ne.s32.totalorder %s80, %s94
      %p96 = scmp.eq.s32.totalorder %s28, 0
      %p97 = por %p95, %p96
      %s99 = sadd.s32 %s98, 1
      %p102 = scmp.eq.s32.totalorder %s22, 1
      %p103 = scmp.ne.s32.totalorder %s98, %s100
      %p104 = scmp.eq.s32.totalorder %s22, 0
      %p105 = por %p103, %p104
      %p106 = scmp.ne.s32.totalorder %s98, %s100
      %p107 = scmp.eq.s32.totalorder %s27, 1
      %p108 = por %p106, %p107
      %p109 = scmp.ne.s32.totalorder %s100, %s101
      %p110 = scmp.eq.s32.totalorder %s27, 0
      %p111 = por %p109, %p110
      %p112 = scmp.ne.s32.totalorder %s100, %s101
      %p113 = scmp.eq.s32.totalorder %s28, 1
      %p114 = por %p112, %p113
      %p116 = scmp.ne.s32.totalorder %s101, %s115
      %p117 = scmp.eq.s32.totalorder %s28, 0
      %p118 = por %p116, %p117
      %s120 = sadd.s32 %s119, 1
      %p123 = scmp.eq.s32.totalorder %s22, 1
      %p124 = scmp.ne.s32.totalorder %s119, %s121
      %p125 = scmp.eq.s32.totalorder %s22, 0
      %p126 = por %p124, %p125
      %p127 = scmp.ne.s32.totalorder %s119, %s121
      %p128 = scmp.eq.s32.totalorder %s27, 1
      %p129 = por %p127, %p128
      %p130 = scmp.ne.s32.totalorder %s121, %s122
      %p131 = scmp.eq.s32.totalorder %s27, 0
      %p132 = por %p130, %p131
      %p133 = scmp.ne.s32.totalorder %s121, %s122
      %p134 = scmp.eq.s32.totalorder %s28, 1
      %p135 = por %p133, %p134
      %p137 = scmp.ne.s32.totalorder %s122, %s136
      %p138 = scmp.eq.s32.totalorder %s28, 0
      %p139 = por %p137, %p138
      %s141 = sadd.s32 %s140, 1
      %p144 = scmp.eq.s32.totalorder %s22, 1
      %p145 = scmp.ne.s32.totalorder %s140, %s142
      %p146 = scmp.eq.s32.totalorder %s22, 0
      %p147 = por %p145, %p146
      %p148 = scmp.ne.s32.totalorder %s140, %s142
      %p149 = scmp.eq.s32.totalorder %s27, 1
      %p150 = por %p148, %p149
      %p151 = scmp.ne.s32.totalorder %s142, %s143
      %p152 = scmp.eq.s32.totalorder %s27, 0
      %p153 = por %p151, %p152
      %p154 = scmp.ne.s32.totalorder %s142, %s143
      %p155 = scmp.eq.s32.totalorder %s28, 1
      %p156 = por %p154, %p155
      %p158 = scmp.ne.s32.totalorder %s143, %s157
      %p159 = scmp.eq.s32.totalorder %s28, 0
      %p160 = por %p158, %p159
      %s162 = sadd.s32 %s161, 1
      %p165 = scmp.eq.s32.totalorder %s22, 1
      %p166 = scmp.ne.s32.totalorder %s161, %s163
      %p167 = scmp.eq.s32.totalorder %s22, 0
      %p168 = por %p166, %p167
      %p169 = scmp.ne.s32.totalorder %s161, %s163
      %p170 = scmp.eq.s32.totalorder %s27, 1
      %p171 = por %p169, %p170
      %p172 = scmp.ne.s32.totalorder %s163, %s164
      %p173 = scmp.eq.s32.totalorder %s27, 0
      %p174 = por %p172, %p173
      %p175 = scmp.ne.s32.totalorder %s163, %s164
      %p176 = scmp.eq.s32.totalorder %s28, 1
      %p177 = por %p175, %p176
      %p179 = scmp.ne.s32.totalorder %s164, %s178
      %p180 = scmp.eq.s32.totalorder %s28, 0
      %p181 = por %p179, %p180
      %s183 = sadd.s32 %s182, 1
      %p186 = scmp.eq.s32.totalorder %s22, 1
      %p187 = scmp.ne.s32.totalorder %s182, %s184
      %p188 = scmp.eq.s32.totalorder %s22, 0
      %p189 = por %p187, %p188
      %p190 = scmp.ne.s32.totalorder %s182, %s184
      %p191 = scmp.eq.s32.totalorder %s27, 1
      %p192 = por %p190, %p191
      %p193 = scmp.ne.s32.totalorder %s184, %s185
      %p194 = scmp.eq.s32.totalorder %s27, 0
      %p195 = por %p193, %p194
      %p196 = scmp.ne.s32.totalorder %s184, %s185
      %p197 = scmp.eq.s32.totalorder %s28, 1
      %p198 = por %p196, %p197
      %p200 = scmp.ne.s32.totalorder %s185, %s199
      %p201 = scmp.eq.s32.totalorder %s28, 0
      %p202 = por %p200, %p201
      %s204 = sadd.s32 %s203, 1
      %p207 = scmp.eq.s32.totalorder %s22, 1
      %p208 = scmp.ne.s32.totalorder %s203, %s205
      %p209 = scmp.eq.s32.totalorder %s22, 0
      %p210 = por %p208, %p209
      %p211 = scmp.ne.s32.totalorder %s203, %s205
      %p212 = scmp.eq.s32.totalorder %s27, 1
      %p213 = por %p211, %p212
      %p214 = scmp.ne.s32.totalorder %s205, %s206
      %p215 = scmp.eq.s32.totalorder %s27, 0
      %p216 = por %p214, %p215
      %p217 = scmp.ne.s32.totalorder %s205, %s206
      %p218 = scmp.eq.s32.totalorder %s28, 1
      %p219 = por %p217, %p218
      %p221 = scmp.ne.s32.totalorder %s206, %s220
      %p222 = scmp.eq.s32.totalorder %s28, 0
      %p223 = por %p221, %p222
      %s224 = ssub.s32 %s22, %s29
      %p225 = scmp.eq.s32.totalorder %s224, 0
      %s227 = sadd.s32 %s226, 1
      %s228 = scalar_select %p225, %s226, %s227
      %p231 = pneg %p225
      %p232 = scmp.eq.s32.totalorder %s22, 1
      %p233 = por %p231, %p232
      %p234 = scmp.ne.s32.totalorder %s226, %s229
      %p235 = scmp.eq.s32.totalorder %s22, 0
      %p236 = por %p234, %p235
      %p237 = scmp.ne.s32.totalorder %s226, %s229
      %p238 = scmp.eq.s32.totalorder %s27, 1
      %p239 = por %p237, %p238
      %p240 = scmp.ne.s32.totalorder %s229, %s230
      %p241 = scmp.eq.s32.totalorder %s27, 0
      %p242 = por %p240, %p241
      %p243 = scmp.ne.s32.totalorder %s229, %s230
      %p244 = scmp.eq.s32.totalorder %s28, 1
      %p245 = por %p243, %p244
      %p247 = scmp.ne.s32.totalorder %s230, %s246
      %p248 = scmp.eq.s32.totalorder %s28, 0
      %p249 = por %p247, %p248
      %p250 = scmp.le.s32.totalorder 1, %s22
      %p251 = scmp.lt.s32.totalorder %s22, 3
      %p252 = pnand %p250, %p251
      %p253 = pneg %p252
      // Predicated region
      $region9: #{tpu_custom_call.1} parent=5 // pred_check
        _
      $region10: #{tpu_custom_call.1} parent=5 // pred_check_branch
        %255 = sbr.rel (%p252) target = $region12
      $region11: #{tpu_custom_call.1} parent=5 // pred_region
        %s256 = ssub.s32 %s22, 1
        // Predicated region
        $region13: #{tpu_custom_call.1} parent=11 // pred_check
          %p257 = pneg %p69
        $region14: #{tpu_custom_call.1} parent=11 // pred_check_branch
          %259 = sbr.rel (%p257) target = $region16
        $region15: #{tpu_custom_call.1} parent=11 // pred_region
          _
        $region16: #{tpu_custom_call.1} parent=11 // pred_fallthru
          _
        // Predicated region
        $region17: #{tpu_custom_call.1} parent=11 // pred_check
          %p260 = pneg %p90
        $region18: #{tpu_custom_call.1} parent=11 // pred_check_branch
          %262 = sbr.rel (%p260) target = $region20
        $region19: #{tpu_custom_call.1} parent=11 // pred_region
          _
        $region20: #{tpu_custom_call.1} parent=11 // pred_fallthru
          _
        // Predicated region
        $region21: #{tpu_custom_call.1} parent=11 // pred_check
          %p263 = pneg %p111
        $region22: #{tpu_custom_call.1} parent=11 // pred_check_branch
          %265 = sbr.rel (%p263) target = $region24
        $region23: #{tpu_custom_call.1} parent=11 // pred_region
          %s267 = ssub.s32 2048, 2048
          %268 = vsyncadd [#allocation6], %s267
          %s269 = sshll.u32 [#allocation5], 4
          %s270 = int_to_ptr.vmem [resolvable:$true] %s269
          %275 = dma.hbm_to_vmem [thread:$0]  %s3, 2048, %s270, [#allocation6], 128, 128, 8
        $region24: #{tpu_custom_call.1} parent=11 // pred_fallthru
          _
        // Predicated region
        $region25: #{tpu_custom_call.1} parent=11 // pred_check
          %p276 = pneg %p132
        $region26: #{tpu_custom_call.1} parent=11 // pred_check_branch
          %278 = sbr.rel (%p276) target = $region28
        $region27: #{tpu_custom_call.1} parent=11 // pred_region
          _
        $region28: #{tpu_custom_call.1} parent=11 // pred_fallthru
          _
        // Predicated region
        $region29: #{tpu_custom_call.1} parent=11 // pred_check
          %p279 = pneg %p153
        $region30: #{tpu_custom_call.1} parent=11 // pred_check_branch
          %281 = sbr.rel (%p279) target = $region32
        $region31: #{tpu_custom_call.1} parent=11 // pred_region
          _
        $region32: #{tpu_custom_call.1} parent=11 // pred_fallthru
          _
        // Predicated region
        $region33: #{tpu_custom_call.1} parent=11 // pred_check
          %p282 = pneg %p174
        $region34: #{tpu_custom_call.1} parent=11 // pred_check_branch
          %284 = sbr.rel (%p282) target = $region36
        $region35: #{tpu_custom_call.1} parent=11 // pred_region
          _
        $region36: #{tpu_custom_call.1} parent=11 // pred_fallthru
          _
        // Predicated region
        $region37: #{tpu_custom_call.1} parent=11 // pred_check
          %p285 = pneg %p195
        $region38: #{tpu_custom_call.1} parent=11 // pred_check_branch
          %287 = sbr.rel (%p285) target = $region40
        $region39: #{tpu_custom_call.1} parent=11 // pred_region
          %s289 = ssub.s32 1024, 1024
          %290 = vsyncadd [#allocation6], %s289
          %s291 = sshll.u32 [#allocation7], 4
          %s292 = int_to_ptr.vmem [resolvable:$true] %s291
          %297 = dma.hbm_to_vmem [thread:$0]  %s7, 1024, %s292, [#allocation6], 64, 64, 4
        $region40: #{tpu_custom_call.1} parent=11 // pred_fallthru
          _
        // Predicated region
        $region41: #{tpu_custom_call.1} parent=11 // pred_check
          %p298 = pneg %p216
        $region42: #{tpu_custom_call.1} parent=11 // pred_check_branch
          %300 = sbr.rel (%p298) target = $region44
        $region43: #{tpu_custom_call.1} parent=11 // pred_region
          _
        $region44: #{tpu_custom_call.1} parent=11 // pred_fallthru
          _
      $region12: #{tpu_custom_call.1} parent=5 // pred_fallthru
        _
      %p301 = scmp.lt.s32.totalorder %s22, 2
      // Predicated region
      $region45: #{tpu_custom_call.1} parent=5 // pred_check
        %p302 = pneg %p301
      $region46: #{tpu_custom_call.1} parent=5 // pred_check_branch
        %304 = sbr.rel (%p302) target = $region48
      $region47: #{tpu_custom_call.1} parent=5 // pred_region
        // Predicated region
        $region49: #{tpu_custom_call.1} parent=47 // pred_check
          %p305 = pneg %p42
        $region50: #{tpu_custom_call.1} parent=47 // pred_check_branch
          %307 = sbr.rel (%p305) target = $region52
        $region51: #{tpu_custom_call.1} parent=47 // pred_region
          %s308 = sand.u32 %s32, 1
          %s309 = scalar_lea.sflag [#allocation3], %s308
          %s310 = sand.u32 %s32, 1
          %s311 = smul.addr %s310, 16
          %s312 = scalar_lea.vmem [#allocation2], %s311
          %s314 = ssub.s32 256, 256
          %315 = vsyncadd %s309, %s314
          %s316 = smul.addr %s22, 2
          %s317 = smul.addr %s316, 128
          %s318 = scalar_lea.hbm %s0, %s317
          %s319 = sshll.u32 %s312, 4
          %s320 = int_to_ptr.vmem [resolvable:$true] %s319
          %325 = dma.hbm_to_vmem [thread:$0]  %s318, 256, %s320, %s309, 128, 128, 8
        $region52: #{tpu_custom_call.1} parent=47 // pred_fallthru
          _
      $region48: #{tpu_custom_call.1} parent=5 // pred_fallthru
        _
      %p326 = scmp.le.s32.totalorder 1, %s22
      %p327 = scmp.lt.s32.totalorder %s22, 3
      %p328 = pnand %p326, %p327
      %p329 = pneg %p328
      // Predicated region
      $region53: #{tpu_custom_call.1} parent=5 // pred_check
        _
      $region54: #{tpu_custom_call.1} parent=5 // pred_check_branch
        %331 = sbr.rel (%p328) target = $region56
      $region55: #{tpu_custom_call.1} parent=5 // pred_region
        %s332 = ssub.s32 %s22, 1
        %s333 = sand.u32 %s35, 1
        %s334 = scalar_lea.sflag [#allocation3], %s333
        %s335 = sand.u32 %s35, 1
        %s336 = smul.addr %s335, 16
        %s337 = scalar_lea.vmem [#allocation2], %s336
        // Predicated region
        $region57: #{tpu_custom_call.1} parent=55 // pred_check
          %p338 = pneg %p48
        $region58: #{tpu_custom_call.1} parent=55 // pred_check_branch
          %340 = sbr.rel (%p338) target = $region60
        $region59: #{tpu_custom_call.1} parent=55 // pred_region
          %341 = dma.done %s334, 256
        $region60: #{tpu_custom_call.1} parent=55 // pred_fallthru
          _
        // Predicated region
        $region61: #{tpu_custom_call.1} parent=55 // pred_check
          %p342 = pneg %p111
        $region62: #{tpu_custom_call.1} parent=55 // pred_check_branch
          %344 = sbr.rel (%p342) target = $region64
        $region63: #{tpu_custom_call.1} parent=55 // pred_region
          %345 = dma.done [#allocation6], 2048
        $region64: #{tpu_custom_call.1} parent=55 // pred_fallthru
          _
        // Predicated region
        $region65: #{tpu_custom_call.1} parent=55 // pred_check
          %p346 = pneg %p195
        $region66: #{tpu_custom_call.1} parent=55 // pred_check_branch
          %348 = sbr.rel (%p346) target = $region68
        $region67: #{tpu_custom_call.1} parent=55 // pred_region
          %349 = dma.done [#allocation6], 1024
        $region68: #{tpu_custom_call.1} parent=55 // pred_fallthru
          _
        %s350 = sand.u32 %s35, 1
        %s351 = scalar_lea.sflag [#allocation3], %s350
        %s352 = sand.u32 %s35, 1
        %s353 = smul.addr %s352, 16
        %s354 = scalar_lea.vmem [#allocation2], %s353
        %p355 = pneg %p48
        %p356 = pneg %p45
        %p357 = pneg %p69
        %p358 = pneg %p66
        %p359 = pneg %p90
        %p360 = pneg %p87
        %p361 = pneg %p111
        %p362 = pneg %p108
        %p363 = pneg %p132
        %p364 = pneg %p129
        %p365 = pneg %p153
        %p366 = pneg %p150
        %p367 = pneg %p174
        %p368 = pneg %p171
        %p369 = pneg %p195
        %p370 = pneg %p192
        %p371 = pneg %p216
        %p372 = pneg %p213
        %p373 = pneg %p242
        %p374 = pneg %p239
        %s375 = sand.u32 %s229, 1
        %s376 = scalar_lea.sflag [#allocation4], %s375
        %s377 = sand.u32 %s229, 1
        %s378 = smul.addr %s377, 16
        %s379 = scalar_lea.vmem [#allocation8], %s378
        %v381 = vld [vmem:[%s337] sm:$0xff]
        %v382 = vld [vmem:[%s337 + $0x8] sm:$0xff]
        %383 = vadd.xlane.f32.xlu0 %v381
        %v384 = vpop.xlane.xlu0 %383
        %385 = vadd.xlane.f32.xlu0 %v382
        %v386 = vpop.xlane.xlu0 %385
        %v387 = vrcp.pop 128.0
        %v388 = vmul.f32 %v384, %v387
        %v389 = vmul.f32 %v386, %v387
        %v390 = vsub.f32 %v381, %v388
        %v391 = vsub.f32 %v382, %v389
        %v392 = vmul.f32 %v390, %v390
        %v393 = vmul.f32 %v391, %v391
        %394 = vadd.xlane.f32.xlu0 %v392
        %v395 = vpop.xlane.xlu0 %394
        %396 = vadd.xlane.f32.xlu0 %v393
        %v397 = vpop.xlane.xlu0 %396
        %v398 = vmul.f32 %v395, %v387
        %v399 = vmul.f32 %v397, %v387
        %v400 = vadd.f32 %v398, 1e-05
        %v401 = vadd.f32 %v399, 1e-05
        %v402 = vrsqrt.pop %v400
        %v403 = vrsqrt.pop %v401
        %v404 = vmul.f32 %v390, %v402
        %v405 = vmul.f32 %v391, %v403
        %v406 = vld [vmem:[%s1] sm:$0x1]
        %v408 = vlaneseq
        %v409 = vshrl.u32 %v408, 7
        %v410 = vsub.s32 0, %v409
        %v411 = vrot.slane %v406, %v410
        %v413 = vmul.f32 %v404, %v411
        %v414 = vmul.f32 %v405, %v411
        %v415 = vld [vmem:[%s2] sm:$0x1]
        %v417 = vlaneseq
        %v418 = vshrl.u32 %v417, 7
        %v419 = vsub.s32 0, %v418
        %v420 = vrot.slane %v415, %v419
        %v422 = vadd.f32 %v413, %v420
        %v423 = vadd.f32 %v414, %v420
        %v424 = vpack.c.bf16 %v423, %v422
        %v425 = vld [vmem:[#allocation5] sm:$0xff]
        %v426 = vld [vmem:[#allocation5 + $0x8] sm:$0xff]
        %v427 = vld [vmem:[#allocation5 + $0x10] sm:$0xff]
        %v428 = vld [vmem:[#allocation5 + $0x18] sm:$0xff]
        %v429 = vld [vmem:[#allocation5 + $0x20] sm:$0xff]
        %v430 = vld [vmem:[#allocation5 + $0x28] sm:$0xff]
        %v431 = vld [vmem:[#allocation5 + $0x30] sm:$0xff]
        %v432 = vld [vmem:[#allocation5 + $0x38] sm:$0xff]
        %v433 = vld [vmem:[#allocation5 + $0x40] sm:$0xff]
        %v434 = vld [vmem:[#allocation5 + $0x48] sm:$0xff]
        %v435 = vld [vmem:[#allocation5 + $0x50] sm:$0xff]
        %v436 = vld [vmem:[#allocation5 + $0x58] sm:$0xff]
        %v437 = vld [vmem:[#allocation5 + $0x60] sm:$0xff]
        %v438 = vld [vmem:[#allocation5 + $0x68] sm:$0xff]
        %v439 = vld [vmem:[#allocation5 + $0x70] sm:$0xff]
        %v440 = vld [vmem:[#allocation5 + $0x78] sm:$0xff]
        %v441 = vld [vmem:[%s4] sm:$0x3]
        %v443 = vlaneseq
        %v444 = vshrl.u32 %v443, 7
        %v445 = vsub.s32 0, %v444
        %v446 = vrot.slane %v441, %v445
        %v447 = vlaneseq
        %v448 = vshrl.u32 %v447, 7
        %v449 = vsub.s32 1, %v448
        %v450 = vrot.slane %v441, %v449
        %v469 = vunpack.c.l.b16 %v425
        %v470 = vunpack.c.h.b16 %v425
        %v471 = vunpack.c.l.b16 %v426
        %v472 = vunpack.c.h.b16 %v426
        %v473 = vunpack.c.l.b16 %v427
        %v474 = vunpack.c.h.b16 %v427
        %v475 = vunpack.c.l.b16 %v428
        %v476 = vunpack.c.h.b16 %v428
        %v477 = vunpack.c.l.b16 %v429
        %v478 = vunpack.c.h.b16 %v429
        %v479 = vunpack.c.l.b16 %v430
        %v480 = vunpack.c.h.b16 %v430
        %v481 = vunpack.c.l.b16 %v431
        %v482 = vunpack.c.h.b16 %v431
        %v483 = vunpack.c.l.b16 %v432
        %v484 = vunpack.c.h.b16 %v432
        %v485 = vunpack.c.l.b16 %v433
        %v486 = vunpack.c.h.b16 %v433
        %v487 = vunpack.c.l.b16 %v434
        %v488 = vunpack.c.h.b16 %v434
        %v489 = vunpack.c.l.b16 %v435
        %v490 = vunpack.c.h.b16 %v435
        %v491 = vunpack.c.l.b16 %v436
        %v492 = vunpack.c.h.b16 %v436
        %v493 = vunpack.c.l.b16 %v437
        %v494 = vunpack.c.h.b16 %v437
        %v495 = vunpack.c.l.b16 %v438
        %v496 = vunpack.c.h.b16 %v438
        %v497 = vunpack.c.l.b16 %v439
        %v498 = vunpack.c.h.b16 %v439
        %v499 = vunpack.c.l.b16 %v440
        %v500 = vunpack.c.h.b16 %v440
        %v501 = vpack.c.b16 %v471, %v469
        %v502 = vpack.c.b16 %v472, %v470
        %v503 = vpack.c.b16 %v475, %v473
        %v504 = vpack.c.b16 %v476, %v474
        %v505 = vpack.c.b16 %v479, %v477
        %v506 = vpack.c.b16 %v480, %v478
        %v507 = vpack.c.b16 %v483, %v481
        %v508 = vpack.c.b16 %v484, %v482
        %v509 = vpack.c.b16 %v487, %v485
        %v510 = vpack.c.b16 %v488, %v486
        %v511 = vpack.c.b16 %v491, %v489
        %v512 = vpack.c.b16 %v492, %v490
        %v513 = vpack.c.b16 %v495, %v493
        %v514 = vpack.c.b16 %v496, %v494
        %v515 = vpack.c.b16 %v499, %v497
        %v516 = vpack.c.b16 %v500, %v498
        %533 = vmatprep.subr.bf16.mxu0 %v502
        %534 = vmatpush1.bf16.msra.mxu0 %v501
        %535 = vmatprep.subr.bf16.mxu0 %v504
        %536 = vmatpush1.bf16.msra.mxu0 %v503
        %537 = vmatprep.subr.bf16.mxu0 %v506
        %538 = vmatpush1.bf16.msra.mxu0 %v505
        %539 = vmatprep.subr.bf16.mxu0 %v508
        %540 = vmatpush1.bf16.msra.mxu0 %v507
        %541 = vmatprep.subr.bf16.mxu0 %v510
        %542 = vmatpush1.bf16.msra.mxu0 %v509
        %543 = vmatprep.subr.bf16.mxu0 %v512
        %544 = vmatpush1.bf16.msra.mxu0 %v511
        %545 = vmatprep.subr.bf16.mxu0 %v514
        %546 = vmatpush1.bf16.msra.mxu0 %v513
        %547 = vmatprep.subr.bf16.mxu0 %v516
        %548 = vmatpush1.bf16.msra.mxu0 %v515
        %549 = vmatprep.subr.bf16.mxu0 0
        %550 = vmatpush1.bf16.msra.mxu0 0
        %551 = vmatprep.subr.bf16.mxu0 0
        %552 = vmatpush1.bf16.msra.mxu0 0
        %553 = vmatprep.subr.bf16.mxu0 0
        %554 = vmatpush1.bf16.msra.mxu0 0
        %555 = vmatprep.subr.bf16.mxu0 0
        %556 = vmatpush1.bf16.msra.mxu0 0
        %557 = vmatprep.subr.bf16.mxu0 0
        %558 = vmatpush1.bf16.msra.mxu0 0
        %559 = vmatprep.subr.bf16.mxu0 0
        %560 = vmatpush1.bf16.msra.mxu0 0
        %561 = vmatprep.subr.bf16.mxu0 0
        %562 = vmatpush1.bf16.msra.mxu0 0
        %563 = vmatprep.subr.bf16.mxu0 0
        %564 = vmatpush1.bf16.msra.mxu0 0
        %565 = vmatprep.mubr.bf16.mxu0 0
        %566 = vmatmul.mubr.bf16.gmra.mrb[0].mxu0 %v424
        %v567 = vpop.f32.mrb[0].mxu0
        %v568 = vadd.f32 %v446, %v567
        %v569 = vpop.f32.mrb[0].mxu0
        %v570 = vadd.f32 %v450, %v569
        %v571 = vpop.f32.mrb[0].mxu0
        %v572 = vadd.f32 %v446, %v571
        %v573 = vpop.f32.mrb[0].mxu0
        %v574 = vadd.f32 %v450, %v573
        %575 = vdwg.mxu0
        %v576 = vxor.u32 %v570, 2147483648
        %v577 = vxor.u32 %v574, 2147483648
        %v578 = vmul.f32 %v576, 1.442695
        %v579 = vpow.pop %v578
        %v580 = vmul.f32 %v577, 1.442695
        %v581 = vpow.pop %v580
        %v582 = vadd.f32 %v579, 1.0
        %v583 = vadd.f32 %v581, 1.0
        %v584 = vrcp.pop %v582
        %v585 = vmul.f32 1.0, %v584
        %v586 = vrcp.pop %v583
        %v587 = vmul.f32 1.0, %v586
        %v588 = vmul.f32 %v568, %v585
        %v589 = vmul.f32 %v572, %v587
        %v590 = vlaneseq
        %v591 = vshrl.u32 %v590, 7
        %v592 = vadd.s32 %v591, 8
        %v593 = vrot.slane %v588, 5
        %v594 = vrot.slane %v589, 5
        %vm595 = vcmp.lt.s32.totalorder %v591, 3
        %v596 = vsel %vm595, %v593, %v594
        %v597 = vsel %vm595, %v594, %v593
        %v598 = vadd.s32 %v591, 4294967293
        %v599 = vadd.s32 %v592, 4294967293
        %vm600 = vcmp.ge.s32.totalorder %v598, 0
        %vm601 = vcmp.ge.s32.totalorder %v599, 0
        %vm602 = vcmp.lt.s32.totalorder %v598, 16
        %vm603 = vcmp.lt.s32.totalorder %v599, 16
        %vm604 = vmand %vm600, %vm602
        %vm605 = vmand %vm601, %vm603
        %v606 = vsel %vm604, %v597, 0.0
        %v607 = vsel %vm605, %v596, 0.0
        %v608 = vld [vmem:[%s5] sm:$0x1]
        %v609 = vlaneseq
        %v610 = vshrl.u32 %v609, 7
        %v611 = vsub.s32 0, %v610
        %v612 = vrot.slane %v608, %v611
        %v613 = vmul.f32 %v606, %v612
        %v614 = vmul.f32 %v607, %v612
        %v615 = vadd.f32 %v613, 0.0
        %v616 = vadd.f32 %v614, 0.0
        %v617 = vrot.slane %v588, 6
        %v618 = vrot.slane %v589, 6
        %vm619 = vcmp.lt.s32.totalorder %v591, 2
        %v620 = vsel %vm619, %v617, %v618
        %v621 = vsel %vm619, %v618, %v617
        %v622 = vadd.s32 %v591, 4294967294
        %v623 = vadd.s32 %v592, 4294967294
        %vm624 = vcmp.ge.s32.totalorder %v622, 0
        %vm625 = vcmp.ge.s32.totalorder %v623, 0
        %vm626 = vcmp.lt.s32.totalorder %v622, 16
        %vm627 = vcmp.lt.s32.totalorder %v623, 16
        %vm628 = vmand %vm624, %vm626
        %vm629 = vmand %vm625, %vm627
        %v630 = vsel %vm628, %v621, 0.0
        %v631 = vsel %vm629, %v620, 0.0
        %v632 = vld [vmem:[%s5 + $0x1] sm:$0x1]
        %v633 = vlaneseq
        %v634 = vshrl.u32 %v633, 7
        %v635 = vsub.s32 0, %v634
        %v636 = vrot.slane %v632, %v635
        %v637 = vmul.f32 %v630, %v636
        %v638 = vmul.f32 %v631, %v636
        %v639 = vadd.f32 %v615, %v637
        %v640 = vadd.f32 %v616, %v638
        %v641 = vrot.slane %v588, 7
        %v642 = vrot.slane %v589, 7
        %vm643 = vcmp.lt.s32.totalorder %v591, 1
        %v644 = vsel %vm643, %v641, %v642
        %v645 = vsel %vm643, %v642, %v641
        %v646 = vadd.s32 %v591, 4294967295
        %v647 = vadd.s32 %v592, 4294967295
        %vm648 = vcmp.ge.s32.totalorder %v646, 0
        %vm649 = vcmp.ge.s32.totalorder %v647, 0
        %vm650 = vcmp.lt.s32.totalorder %v646, 16
        %vm651 = vcmp.lt.s32.totalorder %v647, 16
        %vm652 = vmand %vm648, %vm650
        %vm653 = vmand %vm649, %vm651
        %v654 = vsel %vm652, %v645, 0.0
        %v655 = vsel %vm653, %v644, 0.0
        %v656 = vld [vmem:[%s5 + $0x2] sm:$0x1]
        %v657 = vlaneseq
        %v658 = vshrl.u32 %v657, 7
        %v659 = vsub.s32 0, %v658
        %v660 = vrot.slane %v656, %v659
        %v661 = vmul.f32 %v654, %v660
        %v662 = vmul.f32 %v655, %v660
        %v663 = vadd.f32 %v639, %v661
        %v664 = vadd.f32 %v640, %v662
        %v665 = vld [vmem:[%s5 + $0x3] sm:$0x1]
        %v666 = vlaneseq
        %v667 = vshrl.u32 %v666, 7
        %v668 = vsub.s32 0, %v667
        %v669 = vrot.slane %v665, %v668
        %v670 = vmul.f32 %v588, %v669
        %v671 = vmul.f32 %v589, %v669
        %v672 = vadd.f32 %v663, %v670
        %v673 = vadd.f32 %v664, %v671
        %v674 = vrot.slane %v588, 1
        %v675 = vrot.slane %v589, 1
        %vm676 = vcmp.lt.s32.totalorder %v591, 7
        %v677 = vsel %vm676, %v674, %v675
        %v678 = vsel %vm676, %v675, %v674
        %v679 = vadd.s32 %v591, 1
        %v680 = vadd.s32 %v592, 1
        %vm681 = vcmp.ge.s32.totalorder %v679, 0
        %vm682 = vcmp.ge.s32.totalorder %v680, 0
        %vm683 = vcmp.lt.s32.totalorder %v679, 16
        %vm684 = vcmp.lt.s32.totalorder %v680, 16
        %vm685 = vmand %vm681, %vm683
        %vm686 = vmand %vm682, %vm684
        %v687 = vsel %vm685, %v677, 0.0
        %v688 = vsel %vm686, %v678, 0.0
        %v689 = vld [vmem:[%s5 + $0x4] sm:$0x1]
        %v690 = vlaneseq
        %v691 = vshrl.u32 %v690, 7
        %v692 = vsub.s32 0, %v691
        %v693 = vrot.slane %v689, %v692
        %v694 = vmul.f32 %v687, %v693
        %v695 = vmul.f32 %v688, %v693
        %v696 = vadd.f32 %v672, %v694
        %v697 = vadd.f32 %v673, %v695
        %v698 = vrot.slane %v588, 2
        %v699 = vrot.slane %v589, 2
        %vm700 = vcmp.lt.s32.totalorder %v591, 6
        %v701 = vsel %vm700, %v698, %v699
        %v702 = vsel %vm700, %v699, %v698
        %v703 = vadd.s32 %v591, 2
        %v704 = vadd.s32 %v592, 2
        %vm705 = vcmp.ge.s32.totalorder %v703, 0
        %vm706 = vcmp.ge.s32.totalorder %v704, 0
        %vm707 = vcmp.lt.s32.totalorder %v703, 16
        %vm708 = vcmp.lt.s32.totalorder %v704, 16
        %vm709 = vmand %vm705, %vm707
        %vm710 = vmand %vm706, %vm708
        %v711 = vsel %vm709, %v701, 0.0
        %v712 = vsel %vm710, %v702, 0.0
        %v713 = vld [vmem:[%s5 + $0x5] sm:$0x1]
        %v714 = vlaneseq
        %v715 = vshrl.u32 %v714, 7
        %v716 = vsub.s32 0, %v715
        %v717 = vrot.slane %v713, %v716
        %v718 = vmul.f32 %v711, %v717
        %v719 = vmul.f32 %v712, %v717
        %v720 = vadd.f32 %v696, %v718
        %v721 = vadd.f32 %v697, %v719
        %v722 = vrot.slane %v588, 3
        %v723 = vrot.slane %v589, 3
        %vm724 = vcmp.lt.s32.totalorder %v591, 5
        %v725 = vsel %vm724, %v722, %v723
        %v726 = vsel %vm724, %v723, %v722
        %v727 = vadd.s32 %v591, 3
        %v728 = vadd.s32 %v592, 3
        %vm729 = vcmp.ge.s32.totalorder %v727, 0
        %vm730 = vcmp.ge.s32.totalorder %v728, 0
        %vm731 = vcmp.lt.s32.totalorder %v727, 16
        %vm732 = vcmp.lt.s32.totalorder %v728, 16
        %vm733 = vmand %vm729, %vm731
        %vm734 = vmand %vm730, %vm732
        %v735 = vsel %vm733, %v725, 0.0
        %v736 = vsel %vm734, %v726, 0.0
        %v737 = vld [vmem:[%s5 + $0x6] sm:$0x1]
        %v738 = vlaneseq
        %v739 = vshrl.u32 %v738, 7
        %v740 = vsub.s32 0, %v739
        %v741 = vrot.slane %v737, %v740
        %v742 = vmul.f32 %v735, %v741
        %v743 = vmul.f32 %v736, %v741
        %v744 = vadd.f32 %v720, %v742
        %v745 = vadd.f32 %v721, %v743
        %v746 = vld [vmem:[%s6] sm:$0x1]
        %v748 = vlaneseq
        %v749 = vshrl.u32 %v748, 7
        %v750 = vsub.s32 0, %v749
        %v751 = vrot.slane %v746, %v750
        %v753 = vadd.f32 %v744, %v751
        %v754 = vadd.f32 %v745, %v751
        %v755 = vxor.u32 %v753, 2147483648
        %v756 = vxor.u32 %v754, 2147483648
        %v757 = vmul.f32 %v755, 1.442695
        %v758 = vpow.pop %v757
        %v759 = vmul.f32 %v756, 1.442695
        %v760 = vpow.pop %v759
        %v761 = vadd.f32 %v758, 1.0
        %v762 = vadd.f32 %v760, 1.0
        %v763 = vrcp.pop %v761
        %v764 = vmul.f32 1.0, %v763
        %v765 = vrcp.pop %v762
        %v766 = vmul.f32 1.0, %v765
        %v767 = vmul.f32 %v753, %v764
        %v768 = vmul.f32 %v754, %v766
        %v769 = vpack.c.bf16 %v768, %v767
        %v770 = vld [vmem:[#allocation7] sm:$0xf]
        %v771 = vld [vmem:[#allocation7 + $0x4] sm:$0xf]
        %v772 = vld [vmem:[#allocation7 + $0x8] sm:$0xf]
        %v773 = vld [vmem:[#allocation7 + $0xc] sm:$0xf]
        %v774 = vld [vmem:[#allocation7 + $0x10] sm:$0xf]
        %v775 = vld [vmem:[#allocation7 + $0x14] sm:$0xf]
        %v776 = vld [vmem:[#allocation7 + $0x18] sm:$0xf]
        %v777 = vld [vmem:[#allocation7 + $0x1c] sm:$0xf]
        %v778 = vld [vmem:[#allocation7 + $0x20] sm:$0xf]
        %v779 = vld [vmem:[#allocation7 + $0x24] sm:$0xf]
        %v780 = vld [vmem:[#allocation7 + $0x28] sm:$0xf]
        %v781 = vld [vmem:[#allocation7 + $0x2c] sm:$0xf]
        %v782 = vld [vmem:[#allocation7 + $0x30] sm:$0xf]
        %v783 = vld [vmem:[#allocation7 + $0x34] sm:$0xf]
        %v784 = vld [vmem:[#allocation7 + $0x38] sm:$0xf]
        %v785 = vld [vmem:[#allocation7 + $0x3c] sm:$0xf]
        %v786 = vld [vmem:[%s8] sm:$0x1]
        %v788 = vlaneseq
        %v789 = vshrl.u32 %v788, 7
        %v790 = vsub.s32 0, %v789
        %v791 = vrot.slane %v786, %v790
        %v809 = vunpack.c.l.b16 %v770
        %v810 = vunpack.c.l.b16 %v771
        %v811 = vunpack.c.l.b16 %v772
        %v812 = vunpack.c.l.b16 %v773
        %v813 = vunpack.c.l.b16 %v774
        %v814 = vunpack.c.l.b16 %v775
        %v815 = vunpack.c.l.b16 %v776
        %v816 = vunpack.c.l.b16 %v777
        %v817 = vunpack.c.l.b16 %v778
        %v818 = vunpack.c.l.b16 %v779
        %v819 = vunpack.c.l.b16 %v780
        %v820 = vunpack.c.l.b16 %v781
        %v821 = vunpack.c.l.b16 %v782
        %v822 = vunpack.c.l.b16 %v783
        %v823 = vunpack.c.l.b16 %v784
        %v824 = vunpack.c.l.b16 %v785
        %v825 = vpack.c.b16 %v810, %v809
        %v826 = vpack.c.b16 %v812, %v811
        %v827 = vpack.c.b16 %v814, %v813
        %v828 = vpack.c.b16 %v816, %v815
        %v829 = vpack.c.b16 %v818, %v817
        %v830 = vpack.c.b16 %v820, %v819
        %v831 = vpack.c.b16 %v822, %v821
        %v832 = vpack.c.b16 %v824, %v823
        %841 = vmatprep.subr.bf16.mxu0 0
        %842 = vmatpush1.bf16.msra.mxu0 %v825
        %843 = vmatprep.subr.bf16.mxu0 0
        %844 = vmatpush1.bf16.msra.mxu0 %v826
        %845 = vmatprep.subr.bf16.mxu0 0
        %846 = vmatpush1.bf16.msra.mxu0 %v827
        %847 = vmatprep.subr.bf16.mxu0 0
        %848 = vmatpush1.bf16.msra.mxu0 %v828
        %849 = vmatprep.subr.bf16.mxu0 0
        %850 = vmatpush1.bf16.msra.mxu0 %v829
        %851 = vmatprep.subr.bf16.mxu0 0
        %852 = vmatpush1.bf16.msra.mxu0 %v830
        %853 = vmatprep.subr.bf16.mxu0 0
        %854 = vmatpush1.bf16.msra.mxu0 %v831
        %855 = vmatprep.subr.bf16.mxu0 0
        %856 = vmatpush1.bf16.msra.mxu0 %v832
        %857 = vmatprep.subr.bf16.mxu0 0
        %858 = vmatpush1.bf16.msra.mxu0 0
        %859 = vmatprep.subr.bf16.mxu0 0
        %860 = vmatpush1.bf16.msra.mxu0 0
        %861 = vmatprep.subr.bf16.mxu0 0
        %862 = vmatpush1.bf16.msra.mxu0 0
        %863 = vmatprep.subr.bf16.mxu0 0
        %864 = vmatpush1.bf16.msra.mxu0 0
        %865 = vmatprep.subr.bf16.mxu0 0
        %866 = vmatpush1.bf16.msra.mxu0 0
        %867 = vmatprep.subr.bf16.mxu0 0
        %868 = vmatpush1.bf16.msra.mxu0 0
        %869 = vmatprep.subr.bf16.mxu0 0
        %870 = vmatpush1.bf16.msra.mxu0 0
        %871 = vmatprep.subr.bf16.mxu0 0
        %872 = vmatpush1.bf16.msra.mxu0 0
        %873 = vmatprep.mubr.bf16.mxu0 0
        %874 = vmatmul.mubr.bf16.gmra.mrb[0].mxu0 %v769
        %v875 = vpop.f32.mrb[0].mxu0
        %v876 = vadd.f32 %v791, %v875
        %v877 = vpop.f32.mrb[0].mxu0
        %v878 = vpop.f32.mrb[0].mxu0
        %v879 = vadd.f32 %v791, %v878
        %v880 = vpop.f32.mrb[0].mxu0
        %881 = vdwg.mxu0
        %882 = vst [vmem:[%s379] sm:$0xff] %v876
        %883 = vst [vmem:[%s379 + $0x8] sm:$0xff] %v879
        %s884 = sand.u32 %s229, 1
        %s885 = scalar_lea.sflag [#allocation4], %s884
        %s886 = sand.u32 %s229, 1
        %s887 = smul.addr %s886, 16
        %s888 = scalar_lea.vmem [#allocation8], %s887
        // Predicated region
        $region69: #{tpu_custom_call.1} parent=55 // pred_check
          %p889 = pneg %p239
        $region70: #{tpu_custom_call.1} parent=55 // pred_check_branch
          %891 = sbr.rel (%p889) target = $region72
        $region71: #{tpu_custom_call.1} parent=55 // pred_region
          %s893 = ssub.s32 256, 256
          %894 = vsyncadd %s885, %s893
          %s895 = smul.addr %s27, 2
          %s896 = smul.addr %s895, 128
          %s897 = scalar_lea.hbm %s9, %s896
          %s898 = sshll.u32 %s888, 4
          %s899 = int_to_ptr.vmem [resolvable:$true] %s898
          %904 = dma.vmem_to_hbm [thread:$0]  %s899, 256, %s897, %s885, 128, 128, 8
        $region72: #{tpu_custom_call.1} parent=55 // pred_fallthru
          _
      $region56: #{tpu_custom_call.1} parent=5 // pred_fallthru
        _
      %p905 = scmp.le.s32.totalorder 2, %s22
      // Predicated region
      $region73: #{tpu_custom_call.1} parent=5 // pred_check
        %p906 = pneg %p905
      $region74: #{tpu_custom_call.1} parent=5 // pred_check_branch
        %908 = sbr.rel (%p906) target = $region76
      $region75: #{tpu_custom_call.1} parent=5 // pred_region
        %s909 = ssub.s32 %s22, 2
        // Predicated region
        $region77: #{tpu_custom_call.1} parent=75 // pred_check
          %p910 = pneg %p245
        $region78: #{tpu_custom_call.1} parent=75 // pred_check_branch
          %912 = sbr.rel (%p910) target = $region80
        $region79: #{tpu_custom_call.1} parent=75 // pred_region
          %s913 = sand.u32 %s230, 1
          %s914 = scalar_lea.sflag [#allocation4], %s913
          %s915 = sand.u32 %s230, 1
          %s916 = smul.addr %s915, 16
          %s917 = scalar_lea.vmem [#allocation8], %s916
          %918 = dma.done %s914, 256
        $region80: #{tpu_custom_call.1} parent=75 // pred_fallthru
          _
      $region76: #{tpu_custom_call.1} parent=5 // pred_fallthru
        _
    $region6: #{tpu_custom_call.1} parent=1 // loop_footer
      %s26 = sadd.s32 1, %s22
    $region7: #{tpu_custom_call.1} parent=1 // loop_footer_branch
      %21 = sbr.rel target = $region3
    $region8: #{tpu_custom_call.1} parent=1 // loop_exit
      _
    %919 = vsyncpa [#allocation3], 1
    %s920 = scalar_lea.sflag [#allocation3], 1
    %921 = vsyncpa %s920, 1
    %922 = vsyncpa [#allocation6], 1
    %923 = vsyncpa [#allocation4], 1
    %s924 = scalar_lea.sflag [#allocation4], 1
    %925 = vsyncpa %s924, 1

</llo_original>
